<compile_context>
chip_gen: v5e
topology: v5e:2x2
jax: 0.10.0
libtpu: 0.0.40
codegen_flags: <defaults>
</compile_context>

<pallas_src>
import math

import jax
import jax.numpy as jnp
from jax.experimental import pallas as pl
from jax.experimental.pallas import tpu as pltpu


def _plm_kernel(x_ref, w_ref, scale_ref, shift_ref, o_ref):
    # x_ref     : (M, Cin)         flattened Bt*L rows, native dtype (bf16/f32)
    # w_ref     : (3, Cin, Cout_p) raw conv taps (0 -> x[l-1], 1 -> x[l], 2 -> x[l+1])
    # scale_ref : (1, Cout_p)      BN(eval) scale, f32
    # shift_ref : (1, Cout_p)      conv-bias + BN shift, f32
    # o_ref     : (1, Bt, Cout_p)  per-sequence mean output, f32
    M, _ = x_ref.shape
    _, Bt, Cout_p = o_ref.shape
    L = M // Bt

    x2 = x_ref[...]                                              # (M, Cin)

    # Three matmuls on the un-shifted input; shift the small f32 OUTPUTS instead
    # of the large bf16 inputs (no big VMEM temporaries, cheap f32 selects).
    p0 = jnp.dot(x2, w_ref[0], preferred_element_type=jnp.float32)   # tap for x[l-1]
    p1 = jnp.dot(x2, w_ref[1], preferred_element_type=jnp.float32)   # tap for x[l]
    p2 = jnp.dot(x2, w_ref[2], preferred_element_type=jnp.float32)   # tap for x[l+1]

    # 2-D row-position mask (no 3-D reshapes of large tensors): position within
    # each length-L sequence of the flattened (Bt*L) row axis.
    rowpos = jax.lax.broadcasted_iota(jnp.int32, (M, 1), 0) % L
    acc = p1
    acc = acc + jnp.where(rowpos > 0, pltpu.roll(p0, shift=1, axis=0), 0.0)
    acc = acc + jnp.where(rowpos < L - 1, pltpu.roll(p2, shift=M - 1, axis=0), 0.0)

    # f32 epilogue: BatchNorm1d(eval) + conv bias, then ReLU.  Dropout = identity.
    y = jnp.maximum(acc * scale_ref[...] + shift_ref[...], 0.0)      # (M, Cout_p)

    # per-sequence mean over L -> (Bt, Cout_p).  (Only small-tensor reshape left.)
    o_ref[0] = jnp.mean(y.reshape(Bt, L, Cout_p), axis=1)


def _tpu_generation_info():
    """(per-core VMEM capacity bytes, TensorCores per chip), with safe fallbacks."""
    vmem_cap = None
    try:
        info = pltpu.get_tpu_info()
        vmem_cap = int(getattr(info, "vmem_capacity_bytes", 0)) or None
    except Exception:
        vmem_cap = None
    try:
        kind = str(getattr(jax.devices()[0], "device_kind", "")).lower()
    except Exception:
        kind = ""
    if vmem_cap is None:
        vmem_cap = 64 << 20            # conservative default if the query is unavailable
    # v7x-class parts: 64 MiB VMEM per TensorCore and 2 TensorCores per chip.
    n_cores = 2 if (vmem_cap <= (64 << 20) or "7" in kind) else 1
    return min(vmem_cap, 128 << 20), n_cores


def _choose_tiling(B, L, Cin, Cout_p, itemsize, vmem_cap, n_cores):
    """Pick Bt (batch elems per grid step), padded batch, grid size, vmem limit."""
    cdiv = lambda a, b: -(-a // b)
    # Bt granularity so a split (Bt*L, Cin) block keeps its sublane dim % 8 == 0.
    g = 8 // math.gcd(L, 8)

    if vmem_cap <= (64 << 20):         # v7x-class core: 64 MiB VMEM
        max_in_block, ceiling = 10 << 20, 48 << 20
    else:                              # v5e / v6e: 128 MiB VMEM -> much bigger tiles
        max_in_block, ceiling = 28 << 20, 100 << 20

    in_row = L * Cin * itemsize                        # input bytes per batch element
    out_row = Cout_p * 4
    tmp_row = 6 * L * Cout_p * 4                       # f32 P0/P1/P2 + rolls + acc/y
    w_bytes = 2 * (3 * Cin * Cout_p * itemsize) + 2 * 2 * Cout_p * 4

    def budget(bt):                                    # double-buffered I/O + weights + scratch
        return 2 * bt * in_row + 2 * bt * out_row + bt * tmp_row + w_bytes

    per_bt = 2 * in_row + 2 * out_row + tmp_row
    bt_cap = max(min(max_in_block // max(in_row, 1),
                     (ceiling - w_bytes - (2 << 20)) // per_bt), 1)
    bt_cap = max((bt_cap // g) * g, g)

    b_one_tile = cdiv(B, g) * g                        # whole (padded) problem as one tile
    bt = min(bt_cap, b_one_tile)                       # biggest tile that fits

    # v7x: make sure the "parallel" grid axis has >= n_cores steps so both
    # TensorCores are busy.  Single-core parts keep one block when it fits
    # (the grid is a serial loop there; splitting only adds per-step overhead).
    if n_cores > 1 and B > g:
        per_core = cdiv(B, n_cores)
        bt = min(bt, max(g, cdiv(per_core, g) * g))

    b_pad = cdiv(B, bt) * bt
    n_blocks = b_pad // bt
    vmem_limit = int(min(max(budget(bt) + (4 << 20), 32 << 20), vmem_cap - (8 << 20)))
    return bt, b_pad, n_blocks, vmem_limit


def plm_encoder_forward(pooled_output, conv_w, conv_b, bn_gamma, bn_beta,
                        bn_mean, bn_var, eps=1e-5):
    """pooled_output: [B, L, C_in] (BERT hidden states, channels last, native dtype).
       conv_w: [C_out, C_in, 3] (PyTorch Conv1d layout), conv_b: [C_out].
       Returns [B, 1, C_out] f32 (matches the torch output after the final permute)."""
    B, L, Cin = pooled_output.shape
    Cout = conv_w.shape[0]
    x = pooled_output                        # keep native dtype (bf16 recommended)
    cdt = x.dtype
    itemsize = jnp.dtype(cdt).itemsize

    # --- one-time parameter prep (plain JAX, f32) -------------------------------
    # BN(eval):  y = (conv(x) + b - mean) * s + beta,  s = gamma / sqrt(var + eps)
    s = bn_gamma.astype(jnp.float32) * jax.lax.rsqrt(bn_var.astype(jnp.float32) + eps)
    shift = (conv_b.astype(jnp.float32) - bn_mean.astype(jnp.float32)) * s \
        + bn_beta.astype(jnp.float32)
    w_taps = jnp.transpose(conv_w.astype(jnp.float32), (2, 1, 0))     # (3, Cin, Cout)

    # lane-dense output: pad Cout up to a multiple of 128 (sliced off below)
    Cout_p = ((Cout + 127) // 128) * 128
    w_taps = jnp.pad(w_taps, ((0, 0), (0, 0), (0, Cout_p - Cout))).astype(cdt)
    scale = jnp.pad(s, (0, Cout_p - Cout)).reshape(1, Cout_p).astype(jnp.float32)
    shift = jnp.pad(shift, (0, Cout_p - Cout)).reshape(1, Cout_p).astype(jnp.float32)

    # --- generation-aware tiling -------------------------------------------------
    vmem_cap, n_cores = _tpu_generation_info()
    Bt, B_pad, n_blocks, vmem_limit = _choose_tiling(
        B, L, Cin, Cout_p, itemsize, vmem_cap, n_cores)
    M = Bt * L

    # flatten batch*seq in the wrapper (contiguous, free) and pad awkward batches
    x_flat = x.reshape(B * L, Cin)
    if B_pad > B:
        x_flat = jnp.pad(x_flat, ((0, (B_pad - B) * L), (0, 0)))

    ce = pl.CostEstimate(
        flops=2 * 3 * B_pad * L * Cin * Cout_p,
        transcendentals=0,
        bytes_accessed=(B_pad * L * Cin * itemsize
                        + 3 * Cin * Cout_p * itemsize
                        + 2 * Cout_p * 4
                        + B_pad * Cout_p * 4))

    out = pl.pallas_call(
        _plm_kernel,
        out_shape=jax.ShapeDtypeStruct((n_blocks, Bt, Cout_p), jnp.float32),
        grid_spec=pltpu.PrefetchScalarGridSpec(
            num_scalar_prefetch=0,
            grid=(n_blocks,),
            in_specs=[
                pl.BlockSpec((M, Cin), lambda b: (b, 0)),
                pl.BlockSpec((3, Cin, Cout_p), lambda b: (0, 0, 0)),
                pl.BlockSpec((1, Cout_p), lambda b: (0, 0)),
                pl.BlockSpec((1, Cout_p), lambda b: (0, 0)),
            ],
            out_specs=pl.BlockSpec((1, Bt, Cout_p), lambda b: (b, 0, 0)),
        ),
        compiler_params=pltpu.CompilerParams(
            dimension_semantics=("parallel",),
            vmem_limit_bytes=vmem_limit,
        ),
        cost_estimate=ce,
    )(x_flat, w_taps, scale, shift)

    out = out.reshape(B_pad, Cout_p)[:B, :Cout]
    return out.reshape(B, 1, Cout)           # [B, 1, out_dim]


def _reference(pooled_output, conv_w, conv_b, g, b_, m, v, eps=1e-5):
    # Plain-JAX f32 reference mirroring the PyTorch forward (eval mode).
    x = jnp.transpose(pooled_output, (0, 2, 1))               # [B, Cin, L]
    y = jax.lax.conv_general_dilated(
        x, conv_w, window_strides=(1,), padding="SAME",
        dimension_numbers=("NCH", "OIH", "NCH"),
        precision=jax.lax.Precision.HIGHEST)
    y = y + conv_b[None, :, None]
    y = (y - m[None, :, None]) / jnp.sqrt(v[None, :, None] + eps)
    y = y * g[None, :, None] + b_[None, :, None]
    y = jnp.maximum(y, 0.0)
    y = jnp.mean(y, axis=2, keepdims=True)                    # [B, Cout, 1]
    return jnp.transpose(y, (0, 2, 1))                        # [B, 1, Cout]


if __name__ == "__main__":
    B, L, PLM_DIM, OUT_DIM = 4, 16, 128, 64

    key = jax.random.PRNGKey(0)
    k0, k1, k2, k3, k4, k5, k6 = jax.random.split(key, 7)

    # Activations in bf16 (typical PLM hidden-state dtype); kernel keeps them bf16.
    pooled_output = jax.random.normal(k0, (B, L, PLM_DIM), dtype=jnp.float32)
    pooled_bf16 = pooled_output.astype(jnp.bfloat16)

    conv_w = 0.05 * jax.random.normal(k1, (OUT_DIM, PLM_DIM, 3), dtype=jnp.float32)
    conv_b = 0.1 * jax.random.normal(k2, (OUT_DIM,), dtype=jnp.float32)
    bn_gamma = 1.0 + 0.1 * jax.random.normal(k3, (OUT_DIM,), dtype=jnp.float32)
    bn_beta = 0.1 * jax.random.normal(k4, (OUT_DIM,), dtype=jnp.float32)
    bn_mean = 0.05 * jax.random.normal(k5, (OUT_DIM,), dtype=jnp.float32)
    bn_var = jnp.abs(1.0 + 0.1 * jax.random.normal(k6, (OUT_DIM,), dtype=jnp.float32))

    out = plm_encoder_forward(pooled_bf16, conv_w, conv_b,
                              bn_gamma, bn_beta, bn_mean, bn_var)
    out = jax.block_until_ready(out)

    # f32 reference computed from the same (bf16-rounded) activations.
    ref = _reference(pooled_bf16.astype(jnp.float32), conv_w, conv_b,
                     bn_gamma, bn_beta, bn_mean, bn_var)
    assert out.shape == (B, 1, OUT_DIM)
    assert jnp.allclose(out, ref, atol=2e-2, rtol=2e-2), "mismatch vs reference"

    print("KERNEL_OK")
</pallas_src>

<mosaic_0001>
module attributes {stable_mosaic.version = 11 : i64} {
  func.func @_plm_kernel(%arg0: i32, %arg1: memref<32x128xbf16, #tpu.memory_space<vmem>>, %arg2: memref<3x128x128xbf16, #tpu.memory_space<vmem>>, %arg3: memref<1x128xf32, #tpu.memory_space<vmem>>, %arg4: memref<1x128xf32, #tpu.memory_space<vmem>>, %arg5: memref<1x2x128xf32, #tpu.memory_space<vmem>>) attributes {dimension_semantics = [#tpu.dimension_semantics<parallel>], iteration_bounds = array<i64: 2>, scalar_prefetch = 0 : i64, scratch_operands = 0 : i64, tpu.core_type = #tpu.core_type<tc>, window_params = [{transform_indices = @transform_0, window_bounds = array<i64: 32, 128>}, {pipeline_mode = #tpu.pipeline_mode<synchronous>, transform_indices = @transform_1, window_bounds = array<i64: 3, 128, 128>}, {pipeline_mode = #tpu.pipeline_mode<synchronous>, transform_indices = @transform_2, window_bounds = array<i64: 1, 128>}, {pipeline_mode = #tpu.pipeline_mode<synchronous>, transform_indices = @transform_3, window_bounds = array<i64: 1, 128>}, {transform_indices = @transform_4, window_bounds = array<i64: 1, 2, 128>}]} {
    %c0 = arith.constant 0 : index
    %c0_0 = arith.constant 0 : index
    %0 = vector.load %arg1[%c0, %c0_0] : memref<32x128xbf16, #tpu.memory_space<vmem>>, vector<32x128xbf16>
    %c0_1 = arith.constant 0 : index
    %c0_2 = arith.constant 0 : index
    %c0_3 = arith.constant 0 : index
    %1 = vector.load %arg2[%c0_1, %c0_2, %c0_3] : memref<3x128x128xbf16, #tpu.memory_space<vmem>>, vector<1x128x128xbf16>
    %2 = vector.shape_cast %1 : vector<1x128x128xbf16> to vector<128x128xbf16>
    %cst = arith.constant dense<0.000000e+00> : vector<32x128xf32>
    %3 = tpu.matmul %0, %2, %cst {dimension_numbers = #tpu.dot_dimension_numbers<[1], [0], [0], [1], [0, 0, 1, 1], [], []>} : vector<32x128xbf16>, vector<128x128xbf16>, vector<32x128xf32> -> vector<32x128xf32>
    %c1 = arith.constant 1 : index
    %c0_4 = arith.constant 0 : index
    %c0_5 = arith.constant 0 : index
    %4 = vector.load %arg2[%c1, %c0_4, %c0_5] : memref<3x128x128xbf16, #tpu.memory_space<vmem>>, vector<1x128x128xbf16>
    %5 = vector.shape_cast %4 : vector<1x128x128xbf16> to vector<128x128xbf16>
    %cst_6 = arith.constant dense<0.000000e+00> : vector<32x128xf32>
    %6 = tpu.matmul %0, %5, %cst_6 {dimension_numbers = #tpu.dot_dimension_numbers<[1], [0], [0], [1], [0, 0, 1, 1], [], []>} : vector<32x128xbf16>, vector<128x128xbf16>, vector<32x128xf32> -> vector<32x128xf32>
    %c2 = arith.constant 2 : index
    %c0_7 = arith.constant 0 : index
    %c0_8 = arith.constant 0 : index
    %7 = vector.load %arg2[%c2, %c0_7, %c0_8] : memref<3x128x128xbf16, #tpu.memory_space<vmem>>, vector<1x128x128xbf16>
    %8 = vector.shape_cast %7 : vector<1x128x128xbf16> to vector<128x128xbf16>
    %cst_9 = arith.constant dense<0.000000e+00> : vector<32x128xf32>
    %9 = tpu.matmul %0, %8, %cst_9 {dimension_numbers = #tpu.dot_dimension_numbers<[1], [0], [0], [1], [0, 0, 1, 1], [], []>} : vector<32x128xbf16>, vector<128x128xbf16>, vector<32x128xf32> -> vector<32x128xf32>
    %10 = tpu.iota {dimensions = array<i32: 0>} : vector<32x1xi32>
    %c16_i32 = arith.constant 16 : i32
    %c0_i32 = arith.constant 0 : i32
    %11 = arith.cmpi eq, %c16_i32, %c0_i32 : i32
    %c1_i32 = arith.constant 1 : i32
    %12 = arith.select %11, %c1_i32, %c16_i32 : i32
    %13 = vector.broadcast %12 : i32 to vector<32x1xi32>
    %14 = arith.remsi %10, %13 : vector<32x1xi32>
    %c0_i32_10 = arith.constant 0 : i32
    %15 = vector.broadcast %c0_i32_10 : i32 to vector<32x1xi32>
    %16 = arith.cmpi ne, %14, %15 : vector<32x1xi32>
    %c0_i32_11 = arith.constant 0 : i32
    %17 = vector.broadcast %c0_i32_11 : i32 to vector<32x1xi32>
    %18 = arith.cmpi slt, %14, %17 : vector<32x1xi32>
    %c0_i32_12 = arith.constant 0 : i32
    %19 = arith.cmpi slt, %12, %c0_i32_12 : i32
    %20 = vector.broadcast %19 : i1 to vector<32x1xi1>
    %21 = vector.broadcast %20 : vector<32x1xi1> to vector<32x1xi1>
    %22 = arith.xori %18, %21 : vector<32x1xi1>
    %23 = arith.andi %22, %16 : vector<32x1xi1>
    %24 = vector.broadcast %12 : i32 to vector<32x1xi32>
    %25 = arith.addi %14, %24 : vector<32x1xi32>
    %26 = arith.select %23, %25, %14 : vector<32x1xi1>, vector<32x1xi32>
    %c0_i32_13 = arith.constant 0 : i32
    %27 = vector.broadcast %c0_i32_13 : i32 to vector<32x1xi32>
    %28 = arith.cmpi sgt, %26, %27 : vector<32x1xi32>
    %c1_i32_14 = arith.constant 1 : i32
    %29 = tpu.dynamic_rotate %3 by %c1_i32_14 dim 0 : vector<32x128xf32>, i32 -> vector<32x128xf32>
    %cst_15 = arith.constant 0.000000e+00 : f32
    %30 = vector.shape_cast %28 : vector<32x1xi1> to vector<32x1xi1>
    %31 = vector.broadcast %30 : vector<32x1xi1> to vector<32x128xi1>
    %32 = vector.broadcast %cst_15 : f32 to vector<32x128xf32>
    %33 = arith.select %31, %29, %32 : vector<32x128xi1>, vector<32x128xf32>
    %34 = arith.addf %6, %33 : vector<32x128xf32>
    %c15_i32 = arith.constant 15 : i32
    %35 = vector.broadcast %c15_i32 : i32 to vector<32x1xi32>
    %36 = arith.cmpi slt, %26, %35 : vector<32x1xi32>
    %c31_i32 = arith.constant 31 : i32
    %37 = tpu.dynamic_rotate %9 by %c31_i32 dim 0 : vector<32x128xf32>, i32 -> vector<32x128xf32>
    %cst_16 = arith.constant 0.000000e+00 : f32
    %38 = vector.shape_cast %36 : vector<32x1xi1> to vector<32x1xi1>
    %39 = vector.broadcast %38 : vector<32x1xi1> to vector<32x128xi1>
    %40 = vector.broadcast %cst_16 : f32 to vector<32x128xf32>
    %41 = arith.select %39, %37, %40 : vector<32x128xi1>, vector<32x128xf32>
    %42 = arith.addf %34, %41 : vector<32x128xf32>
    %c0_17 = arith.constant 0 : index
    %c0_18 = arith.constant 0 : index
    %43 = vector.load %arg3[%c0_17, %c0_18] : memref<1x128xf32, #tpu.memory_space<vmem>>, vector<1x128xf32>
    %44 = vector.broadcast %43 : vector<1x128xf32> to vector<32x128xf32>
    %45 = arith.mulf %42, %44 : vector<32x128xf32>
    %c0_19 = arith.constant 0 : index
    %c0_20 = arith.constant 0 : index
    %46 = vector.load %arg4[%c0_19, %c0_20] : memref<1x128xf32, #tpu.memory_space<vmem>>, vector<1x128xf32>
    %47 = vector.broadcast %46 : vector<1x128xf32> to vector<32x128xf32>
    %48 = arith.addf %45, %47 : vector<32x128xf32>
    %cst_21 = arith.constant 0.000000e+00 : f32
    %49 = vector.broadcast %cst_21 : f32 to vector<32x128xf32>
    %50 = arith.maximumf %48, %49 : vector<32x128xf32>
    %51 = vector.shape_cast %50 : vector<32x128xf32> to vector<2x16x128xf32>
    %cst_22 = arith.constant dense<0.000000e+00> : vector<2x128xf32>
    %52 = vector.multi_reduction <add>, %51, %cst_22 [1] : vector<2x16x128xf32> to vector<2x128xf32>
    %cst_23 = arith.constant 1.600000e+01 : f32
    %53 = vector.broadcast %cst_23 : f32 to vector<2x128xf32>
    %54 = arith.divf %52, %53 : vector<2x128xf32>
    %c0_24 = arith.constant 0 : index
    %c0_25 = arith.constant 0 : index
    %c0_26 = arith.constant 0 : index
    %55 = vector.load %arg5[%c0_24, %c0_25, %c0_26] : memref<1x2x128xf32, #tpu.memory_space<vmem>>, vector<1x2x128xf32>
    %56 = vector.shape_cast %55 : vector<1x2x128xf32> to vector<2x128xf32>
    %57 = vector.shape_cast %54 : vector<2x128xf32> to vector<1x2x128xf32>
    tpu.vector_store %arg5[%c0_24, %c0_25, %c0_26], %57 {strides = array<i32>} : memref<1x2x128xf32, #tpu.memory_space<vmem>>, vector<1x2x128xf32>,
    return
  }
  func.func @transform_0(%arg0: i32) -> (i32, i32) {
    %c0_i32 = arith.constant 0 : i32
    %c0_i32_0 = arith.constant 0 : i32
    return %arg0, %c0_i32 : i32, i32
  }
  func.func @transform_1(%arg0: i32) -> (i32, i32, i32) {
    %c0_i32 = arith.constant 0 : i32
    %c0_i32_0 = arith.constant 0 : i32
    %c0_i32_1 = arith.constant 0 : i32
    %c0_i32_2 = arith.constant 0 : i32
    return %c0_i32, %c0_i32_0, %c0_i32_1 : i32, i32, i32
  }
  func.func @transform_2(%arg0: i32) -> (i32, i32) {
    %c0_i32 = arith.constant 0 : i32
    %c0_i32_0 = arith.constant 0 : i32
    %c0_i32_1 = arith.constant 0 : i32
    return %c0_i32, %c0_i32_0 : i32, i32
  }
  func.func @transform_3(%arg0: i32) -> (i32, i32) {
    %c0_i32 = arith.constant 0 : i32
    %c0_i32_0 = arith.constant 0 : i32
    %c0_i32_1 = arith.constant 0 : i32
    return %c0_i32, %c0_i32_0 : i32, i32
  }
  func.func @transform_4(%arg0: i32) -> (i32, i32, i32) {
    %c0_i32 = arith.constant 0 : i32
    %c0_i32_0 = arith.constant 0 : i32
    %c0_i32_1 = arith.constant 0 : i32
    return %arg0, %c0_i32, %c0_i32_0 : i32, i32, i32
  }
}

</mosaic_0001>

<llo_original>
// kernel: tpu_custom_call.1
$region0: #{tpu_custom_call.1}
  #allocation0 [shape = 'u32[]', space=smem, size = 0x4, offset = 0x4, fixed_abs, tag = 'smem constant byte address 0x4 - core index']
  #allocation1 [shape = 'u32[72,128]{1,0:T(1,128)}', space=vmem, size = 0x9000, scoped, tag = 'internal scratch']
  %s0 = inlined_call_operand.hbm [shape: bf16[64,128], index: 0, kind: input, shape index: {}]
  %s1 = inlined_call_operand.hbm [shape: bf16[3,128,128], index: 1, kind: input, shape index: {}]
  %s2 = inlined_call_operand.vmem [shape: f32[1,128], index: 2, kind: input, shape index: {}]
  %s3 = inlined_call_operand.vmem [shape: f32[1,128], index: 3, kind: input, shape index: {}]
  %s4 = inlined_call_operand.hbm [shape: f32[2,2,128], index: 4, kind: output, shape index: {}]
  %s5 = sld [smem:[#allocation0]]
  $region57: #{tpu_custom_call.1} parent=0
    _
  %s7 = ssub.s32 1, %s5
  %s8 = scalar_select 0, %s7, %s5
  $region1: #{tpu_custom_call.1} parent=0
    #allocation2 [shape = 'u8[16384]{0}', space=vmem, size = 0x4000, scoped, tag = 'input window, operand 0']
    #allocation3 [shape = 's32[2]{0}', space=sflag, size = 0x8, scoped, tag = 'scoped memory for tpu_custom_call.1']
    #allocation4 [shape = 's32[2]{0}', space=sflag, size = 0x8, scoped, tag = 'scoped memory for tpu_custom_call.1']
    #allocation5 [shape = 'u8[98304]{0}', space=vmem, size = 0x18000, scoped, tag = 'input window, operand 1, single buffered']
    #allocation6 [shape = 's32[1]{0}', space=sflag, size = 0x4, scoped, tag = 'scoped memory for tpu_custom_call.1']
    #allocation7 [shape = 'u8[2048]{0}', space=vmem, size = 0x800, scoped, tag = 'output window, operand 0']
    %9 = vsyncpa [#allocation3], 0
    %s10 = scalar_lea.sflag [#allocation3], 1
    %11 = vsyncpa %s10, 0
    %12 = vsyncpa [#allocation6], 0
    %13 = vsyncpa [#allocation4], 0
    %s14 = scalar_lea.sflag [#allocation4], 1
    %15 = vsyncpa %s14, 0
    loop: start=0, step=1, limit=4
    $region2: #{tpu_custom_call.1} parent=1 // loop_pre_header
      _
    $region3: #{tpu_custom_call.1} parent=1 // loop_header
      %s17 = sphi 0, %s21
      %p18 = scmp.ge.s32.totalorder %s17, 4
      %s27 = sphi 0, %s29
      %s30 = sphi 0, %s27
      %s31 = sphi 0, %s30
      %s47 = sphi 0, %s31
      %s51 = sphi 0, %s51
      %s53 = sphi 0, %s51
      %s54 = sphi 0, %s53
      %s68 = sphi 0, %s54
      %s72 = sphi 0, %s72
      %s74 = sphi 0, %s72
      %s75 = sphi 0, %s74
      %s89 = sphi 0, %s75
      %s93 = sphi 0, %s93
      %s95 = sphi 0, %s93
      %s96 = sphi 0, %s95
      %s110 = sphi 0, %s96
      %s116 = sphi 0, %s118
      %s119 = sphi 0, %s116
      %s120 = sphi 0, %s119
      %s136 = sphi 0, %s120
    $region4: #{tpu_custom_call.1} parent=1 // loop_header_branch
      %20 = sbr.rel (%p18) target = $region8
    $region5: #{tpu_custom_call.1} parent=1 // loop_body
      %s22 = ssub.s32 %s17, 1
      %s23 = ssub.s32 %s17, 2
      %s24 = sadd.s32 %s17, 1
      %s25 = ssub.s32 %s17, %s24
      %p26 = scmp.eq.s32.totalorder %s25, 0
      %s28 = sadd.s32 %s27, 1
      %s29 = scalar_select %p26, %s27, %s28
      %p32 = pneg %p26
      %p33 = scmp.eq.s32.totalorder %s17, 1
      %p34 = por %p32, %p33
      %p35 = scmp.ne.s32.totalorder %s27, %s30
      %p36 = scmp.eq.s32.totalorder %s17, 0
      %p37 = por %p35, %p36
      %p38 = scmp.ne.s32.totalorder %s27, %s30
      %p39 = scmp.eq.s32.totalorder %s22, 1
      %p40 = por %p38, %p39
      %p41 = scmp.ne.s32.totalorder %s30, %s31
      %p42 = scmp.eq.s32.totalorder %s22, 0
      %p43 = por %p41, %p42
      %p44 = scmp.ne.s32.totalorder %s30, %s31
      %p45 = scmp.eq.s32.totalorder %s23, 1
      %p46 = por %p44, %p45
      %p48 = scmp.ne.s32.totalorder %s31, %s47
      %p49 = scmp.eq.s32.totalorder %s23, 0
      %p50 = por %p48, %p49
      %s52 = sadd.s32 %s51, 1
      %p55 = scmp.eq.s32.totalorder %s17, 1
      %p56 = scmp.ne.s32.totalorder %s51, %s53
      %p57 = scmp.eq.s32.totalorder %s17, 0
      %p58 = por %p56, %p57
      %p59 = scmp.ne.s32.totalorder %s51, %s53
      %p60 = scmp.eq.s32.totalorder %s22, 1
      %p61 = por %p59, %p60
      %p62 = scmp.ne.s32.totalorder %s53, %s54
      %p63 = scmp.eq.s32.totalorder %s22, 0
      %p64 = por %p62, %p63
      %p65 = scmp.ne.s32.totalorder %s53, %s54
      %p66 = scmp.eq.s32.totalorder %s23, 1
      %p67 = por %p65, %p66
      %p69 = scmp.ne.s32.totalorder %s54, %s68
      %p70 = scmp.eq.s32.totalorder %s23, 0
      %p71 = por %p69, %p70
      %s73 = sadd.s32 %s72, 1
      %p76 = scmp.eq.s32.totalorder %s17, 1
      %p77 = scmp.ne.s32.totalorder %s72, %s74
      %p78 = scmp.eq.s32.totalorder %s17, 0
      %p79 = por %p77, %p78
      %p80 = scmp.ne.s32.totalorder %s72, %s74
      %p81 = scmp.eq.s32.totalorder %s22, 1
      %p82 = por %p80, %p81
      %p83 = scmp.ne.s32.totalorder %s74, %s75
      %p84 = scmp.eq.s32.totalorder %s22, 0
      %p85 = por %p83, %p84
      %p86 = scmp.ne.s32.totalorder %s74, %s75
      %p87 = scmp.eq.s32.totalorder %s23, 1
      %p88 = por %p86, %p87
      %p90 = scmp.ne.s32.totalorder %s75, %s89
      %p91 = scmp.eq.s32.totalorder %s23, 0
      %p92 = por %p90, %p91
      %s94 = sadd.s32 %s93, 1
      %p97 = scmp.eq.s32.totalorder %s17, 1
      %p98 = scmp.ne.s32.totalorder %s93, %s95
      %p99 = scmp.eq.s32.totalorder %s17, 0
      %p100 = por %p98, %p99
      %p101 = scmp.ne.s32.totalorder %s93, %s95
      %p102 = scmp.eq.s32.totalorder %s22, 1
      %p103 = por %p101, %p102
      %p104 = scmp.ne.s32.totalorder %s95, %s96
      %p105 = scmp.eq.s32.totalorder %s22, 0
      %p106 = por %p104, %p105
      %p107 = scmp.ne.s32.totalorder %s95, %s96
      %p108 = scmp.eq.s32.totalorder %s23, 1
      %p109 = por %p107, %p108
      %p111 = scmp.ne.s32.totalorder %s96, %s110
      %p112 = scmp.eq.s32.totalorder %s23, 0
      %p113 = por %p111, %p112
      %s114 = ssub.s32 %s17, %s24
      %p115 = scmp.eq.s32.totalorder %s114, 0
      %s117 = sadd.s32 %s116, 1
      %s118 = scalar_select %p115, %s116, %s117
      %p121 = pneg %p115
      %p122 = scmp.eq.s32.totalorder %s17, 1
      %p123 = por %p121, %p122
      %p124 = scmp.ne.s32.totalorder %s116, %s119
      %p125 = scmp.eq.s32.totalorder %s17, 0
      %p126 = por %p124, %p125
      %p127 = scmp.ne.s32.totalorder %s116, %s119
      %p128 = scmp.eq.s32.totalorder %s22, 1
      %p129 = por %p127, %p128
      %p130 = scmp.ne.s32.totalorder %s119, %s120
      %p131 = scmp.eq.s32.totalorder %s22, 0
      %p132 = por %p130, %p131
      %p133 = scmp.ne.s32.totalorder %s119, %s120
      %p134 = scmp.eq.s32.totalorder %s23, 1
      %p135 = por %p133, %p134
      %p137 = scmp.ne.s32.totalorder %s120, %s136
      %p138 = scmp.eq.s32.totalorder %s23, 0
      %p139 = por %p137, %p138
      %p140 = scmp.le.s32.totalorder 1, %s17
      %p141 = scmp.lt.s32.totalorder %s17, 3
      %p142 = pnand %p140, %p141
      %p143 = pneg %p142
      // Predicated region
      $region9: #{tpu_custom_call.1} parent=5 // pred_check
        _
      $region10: #{tpu_custom_call.1} parent=5 // pred_check_branch
        %145 = sbr.rel (%p142) target = $region12
      $region11: #{tpu_custom_call.1} parent=5 // pred_region
        %s146 = ssub.s32 %s17, 1
        // Predicated region
        $region13: #{tpu_custom_call.1} parent=11 // pred_check
          %p147 = pneg %p64
        $region14: #{tpu_custom_call.1} parent=11 // pred_check_branch
          %149 = sbr.rel (%p147) target = $region16
        $region15: #{tpu_custom_call.1} parent=11 // pred_region
          %151 = vsyncadd [#allocation6], 0
          %s152 = sshll.u32 %s1, 4
          %s153 = int_to_ptr.hbm [resolvable:$true] %s152
          %s154 = sshll.u32 [#allocation5], 4
          %s155 = int_to_ptr.vmem [resolvable:$true] %s154
          %160 = dma.hbm_to_vmem [thread:$0]  %s153, 3072, %s155, [#allocation6], 64, 64, 4
        $region16: #{tpu_custom_call.1} parent=11 // pred_fallthru
          _
        // Predicated region
        $region17: #{tpu_custom_call.1} parent=11 // pred_check
          %p161 = pneg %p85
        $region18: #{tpu_custom_call.1} parent=11 // pred_check_branch
          %163 = sbr.rel (%p161) target = $region20
        $region19: #{tpu_custom_call.1} parent=11 // pred_region
          _
        $region20: #{tpu_custom_call.1} parent=11 // pred_fallthru
          _
        // Predicated region
        $region21: #{tpu_custom_call.1} parent=11 // pred_check
          %p164 = pneg %p106
        $region22: #{tpu_custom_call.1} parent=11 // pred_check_branch
          %166 = sbr.rel (%p164) target = $region24
        $region23: #{tpu_custom_call.1} parent=11 // pred_region
          _
        $region24: #{tpu_custom_call.1} parent=11 // pred_fallthru
          _
      $region12: #{tpu_custom_call.1} parent=5 // pred_fallthru
        _
      %p167 = scmp.lt.s32.totalorder %s17, 2
      // Predicated region
      $region25: #{tpu_custom_call.1} parent=5 // pred_check
        %p168 = pneg %p167
      $region26: #{tpu_custom_call.1} parent=5 // pred_check_branch
        %170 = sbr.rel (%p168) target = $region28
      $region27: #{tpu_custom_call.1} parent=5 // pred_region
        // Predicated region
        $region29: #{tpu_custom_call.1} parent=27 // pred_check
          %p171 = pneg %p37
        $region30: #{tpu_custom_call.1} parent=27 // pred_check_branch
          %173 = sbr.rel (%p171) target = $region32
        $region31: #{tpu_custom_call.1} parent=27 // pred_region
          %s174 = sand.u32 %s27, 1
          %s175 = scalar_lea.sflag [#allocation3], %s174
          %s176 = sand.u32 %s27, 1
          %s177 = smul.addr %s176, 16
          %s178 = scalar_lea.vmem [#allocation2], %s177
          %s179 = smul.u32 4, %s17
          %181 = vsyncadd %s175, 0
          %s182 = smul.addr %s179, 4
          %s183 = scalar_lea.hbm %s0, %s182
          %s184 = sshll.u32 %s183, 4
          %s185 = int_to_ptr.hbm [resolvable:$true] %s184
          %s186 = sshll.u32 %s178, 4
          %s187 = int_to_ptr.vmem [resolvable:$true] %s186
          %192 = dma.hbm_to_vmem [thread:$0]  %s185, 256, %s187, %s175, 64, 64, 4
        $region32: #{tpu_custom_call.1} parent=27 // pred_fallthru
          _
      $region28: #{tpu_custom_call.1} parent=5 // pred_fallthru
        _
      %p193 = scmp.le.s32.totalorder 1, %s17
      %p194 = scmp.lt.s32.totalorder %s17, 3
      %p195 = pnand %p193, %p194
      %p196 = pneg %p195
      // Predicated region
      $region33: #{tpu_custom_call.1} parent=5 // pred_check
        _
      $region34: #{tpu_custom_call.1} parent=5 // pred_check_branch
        %198 = sbr.rel (%p195) target = $region36
      $region35: #{tpu_custom_call.1} parent=5 // pred_region
        %s199 = ssub.s32 %s17, 1
        %s200 = sand.u32 %s30, 1
        %s201 = scalar_lea.sflag [#allocation3], %s200
        %s202 = sand.u32 %s30, 1
        %s203 = smul.addr %s202, 16
        %s204 = scalar_lea.vmem [#allocation2], %s203
        // Predicated region
        $region37: #{tpu_custom_call.1} parent=35 // pred_check
          %p205 = pneg %p43
        $region38: #{tpu_custom_call.1} parent=35 // pred_check_branch
          %207 = sbr.rel (%p205) target = $region40
        $region39: #{tpu_custom_call.1} parent=35 // pred_region
          %209 = dma.done %s201, 256
        $region40: #{tpu_custom_call.1} parent=35 // pred_fallthru
          _
        // Predicated region
        $region41: #{tpu_custom_call.1} parent=35 // pred_check
          %p210 = pneg %p64
        $region42: #{tpu_custom_call.1} parent=35 // pred_check_branch
          %212 = sbr.rel (%p210) target = $region44
        $region43: #{tpu_custom_call.1} parent=35 // pred_region
          %214 = dma.done [#allocation6], 3072
        $region44: #{tpu_custom_call.1} parent=35 // pred_fallthru
          _
        %s215 = sand.u32 %s30, 1
        %s216 = scalar_lea.sflag [#allocation3], %s215
        %s217 = sand.u32 %s30, 1
        %s218 = smul.addr %s217, 16
        %s219 = scalar_lea.vmem [#allocation2], %s218
        %p220 = pneg %p43
        %p221 = pneg %p40
        %p222 = pneg %p64
        %p223 = pneg %p61
        %p224 = pneg %p85
        %p225 = pneg %p82
        %p226 = pneg %p106
        %p227 = pneg %p103
        %p228 = pneg %p132
        %p229 = pneg %p129
        %s230 = sand.u32 %s119, 1
        %s231 = scalar_lea.sflag [#allocation4], %s230
        %s232 = sand.u32 %s119, 1
        %s233 = smul.addr %s232, 2
        %s234 = scalar_lea.vmem [#allocation7], %s233
        %s235 = smul.u32 4, %s22
        %v236 = vld [vmem:[%s204] sm:$0xf]
        %v237 = vld [vmem:[%s204 + $0x4] sm:$0xf]
        %v238 = vld [vmem:[%s204 + $0x8] sm:$0xf]
        %v239 = vld [vmem:[%s204 + $0xc] sm:$0xf]
        %v240 = vld [vmem:[#allocation5] sm:$0xf]
        %v241 = vld [vmem:[#allocation5 + $0x4] sm:$0xf]
        %v242 = vld [vmem:[#allocation5 + $0x8] sm:$0xf]
        %v243 = vld [vmem:[#allocation5 + $0xc] sm:$0xf]
        %v244 = vld [vmem:[#allocation5 + $0x10] sm:$0xf]
        %v245 = vld [vmem:[#allocation5 + $0x14] sm:$0xf]
        %v246 = vld [vmem:[#allocation5 + $0x18] sm:$0xf]
        %v247 = vld [vmem:[#allocation5 + $0x1c] sm:$0xf]
        %v248 = vld [vmem:[#allocation5 + $0x20] sm:$0xf]
        %v249 = vld [vmem:[#allocation5 + $0x24] sm:$0xf]
        %v250 = vld [vmem:[#allocation5 + $0x28] sm:$0xf]
        %v251 = vld [vmem:[#allocation5 + $0x2c] sm:$0xf]
        %v252 = vld [vmem:[#allocation5 + $0x30] sm:$0xf]
        %v253 = vld [vmem:[#allocation5 + $0x34] sm:$0xf]
        %v254 = vld [vmem:[#allocation5 + $0x38] sm:$0xf]
        %v255 = vld [vmem:[#allocation5 + $0x3c] sm:$0xf]
        %v260 = vunpack.c.l.b16 %v236
        %v261 = vunpack.c.l.b16 %v237
        %v262 = vunpack.c.l.b16 %v238
        %v263 = vunpack.c.l.b16 %v239
        %v264 = vpack.c.b16 %v261, %v260
        %v265 = vpack.c.b16 %v263, %v262
        %v284 = vunpack.c.l.b16 %v240
        %v285 = vunpack.c.l.b16 %v241
        %v286 = vunpack.c.l.b16 %v242
        %v287 = vunpack.c.l.b16 %v243
        %v288 = vunpack.c.l.b16 %v244
        %v289 = vunpack.c.l.b16 %v245
        %v290 = vunpack.c.l.b16 %v246
        %v291 = vunpack.c.l.b16 %v247
        %v292 = vunpack.c.l.b16 %v248
        %v293 = vunpack.c.l.b16 %v249
        %v294 = vunpack.c.l.b16 %v250
        %v295 = vunpack.c.l.b16 %v251
        %v296 = vunpack.c.l.b16 %v252
        %v297 = vunpack.c.l.b16 %v253
        %v298 = vunpack.c.l.b16 %v254
        %v299 = vunpack.c.l.b16 %v255
        %v300 = vpack.c.b16 %v285, %v284
        %v301 = vpack.c.b16 %v287, %v286
        %v302 = vpack.c.b16 %v289, %v288
        %v303 = vpack.c.b16 %v291, %v290
        %v304 = vpack.c.b16 %v293, %v292
        %v305 = vpack.c.b16 %v295, %v294
        %v306 = vpack.c.b16 %v297, %v296
        %v307 = vpack.c.b16 %v299, %v298
        %316 = vmatpush.bf16.msra.mxu0 %v307
        %317 = vmatpush.bf16.msra.mxu0 %v306
        %318 = vmatpush.bf16.msra.mxu0 %v305
        %319 = vmatpush.bf16.msra.mxu0 %v304
        %320 = vmatpush.bf16.msra.mxu0 %v303
        %321 = vmatpush.bf16.msra.mxu0 %v302
        %322 = vmatpush.bf16.msra.mxu0 %v301
        %323 = vmatpush.bf16.msra.mxu0 %v300
        %324 = vmatmul.bf16.gmra.mxu0 %v264
        %v325 = vpop.f32.mrf.mxu0
        %v326 = vadd.f32 0.0, %v325
        %v327 = vpop.f32.mrf.mxu0
        %v328 = vadd.f32 0.0, %v327
        %329 = vmatmul.bf16.gmra.mxu0 %v265
        %v330 = vpop.f32.mrf.mxu0
        %v331 = vadd.f32 0.0, %v330
        %v332 = vpop.f32.mrf.mxu0
        %v333 = vadd.f32 0.0, %v332
        %334 = vdwg.mxu0
        %s335 = scalar_lea.vmem [#allocation5], 64
        %v336 = vld [vmem:[%s335] sm:$0xf]
        %v337 = vld [vmem:[%s335 + $0x4] sm:$0xf]
        %v338 = vld [vmem:[%s335 + $0x8] sm:$0xf]
        %v339 = vld [vmem:[%s335 + $0xc] sm:$0xf]
        %v340 = vld [vmem:[%s335 + $0x10] sm:$0xf]
        %v341 = vld [vmem:[%s335 + $0x14] sm:$0xf]
        %v342 = vld [vmem:[%s335 + $0x18] sm:$0xf]
        %v343 = vld [vmem:[%s335 + $0x1c] sm:$0xf]
        %v344 = vld [vmem:[%s335 + $0x20] sm:$0xf]
        %v345 = vld [vmem:[%s335 + $0x24] sm:$0xf]
        %v346 = vld [vmem:[%s335 + $0x28] sm:$0xf]
        %v347 = vld [vmem:[%s335 + $0x2c] sm:$0xf]
        %v348 = vld [vmem:[%s335 + $0x30] sm:$0xf]
        %v349 = vld [vmem:[%s335 + $0x34] sm:$0xf]
        %v350 = vld [vmem:[%s335 + $0x38] sm:$0xf]
        %v351 = vld [vmem:[%s335 + $0x3c] sm:$0xf]
        %s352 = scalar_lea.vmem [#allocation5], 128
        %v353 = vld [vmem:[%s352] sm:$0xf]
        %v354 = vld [vmem:[%s352 + $0x4] sm:$0xf]
        %v355 = vld [vmem:[%s352 + $0x8] sm:$0xf]
        %v356 = vld [vmem:[%s352 + $0xc] sm:$0xf]
        %v357 = vld [vmem:[%s352 + $0x10] sm:$0xf]
        %v358 = vld [vmem:[%s352 + $0x14] sm:$0xf]
        %v359 = vld [vmem:[%s352 + $0x18] sm:$0xf]
        %v360 = vld [vmem:[%s352 + $0x1c] sm:$0xf]
        %v361 = vld [vmem:[%s352 + $0x20] sm:$0xf]
        %v362 = vld [vmem:[%s352 + $0x24] sm:$0xf]
        %v363 = vld [vmem:[%s352 + $0x28] sm:$0xf]
        %v364 = vld [vmem:[%s352 + $0x2c] sm:$0xf]
        %v365 = vld [vmem:[%s352 + $0x30] sm:$0xf]
        %v366 = vld [vmem:[%s352 + $0x34] sm:$0xf]
        %v367 = vld [vmem:[%s352 + $0x38] sm:$0xf]
        %v368 = vld [vmem:[%s352 + $0x3c] sm:$0xf]
        %v385 = vunpack.c.l.b16 %v353
        %v386 = vunpack.c.l.b16 %v354
        %v387 = vunpack.c.l.b16 %v355
        %v388 = vunpack.c.l.b16 %v356
        %v389 = vunpack.c.l.b16 %v357
        %v390 = vunpack.c.l.b16 %v358
        %v391 = vunpack.c.l.b16 %v359
        %v392 = vunpack.c.l.b16 %v360
        %v393 = vunpack.c.l.b16 %v361
        %v394 = vunpack.c.l.b16 %v362
        %v395 = vunpack.c.l.b16 %v363
        %v396 = vunpack.c.l.b16 %v364
        %v397 = vunpack.c.l.b16 %v365
        %v398 = vunpack.c.l.b16 %v366
        %v399 = vunpack.c.l.b16 %v367
        %v400 = vunpack.c.l.b16 %v368
        %v401 = vpack.c.b16 %v386, %v385
        %v402 = vpack.c.b16 %v388, %v387
        %v403 = vpack.c.b16 %v390, %v389
        %v404 = vpack.c.b16 %v392, %v391
        %v405 = vpack.c.b16 %v394, %v393
        %v406 = vpack.c.b16 %v396, %v395
        %v407 = vpack.c.b16 %v398, %v397
        %v408 = vpack.c.b16 %v400, %v399
        %417 = vmatpush.bf16.msra.mxu0 %v408
        %418 = vmatpush.bf16.msra.mxu0 %v407
        %419 = vmatpush.bf16.msra.mxu0 %v406
        %420 = vmatpush.bf16.msra.mxu0 %v405
        %421 = vmatpush.bf16.msra.mxu0 %v404
        %422 = vmatpush.bf16.msra.mxu0 %v403
        %423 = vmatpush.bf16.msra.mxu0 %v402
        %424 = vmatpush.bf16.msra.mxu0 %v401
        %425 = vmatmul.bf16.gmra.mxu0 %v264
        %v426 = vpop.f32.mrf.mxu0
        %v427 = vadd.f32 0.0, %v426
        %v428 = vpop.f32.mrf.mxu0
        %v429 = vadd.f32 0.0, %v428
        %430 = vmatmul.bf16.gmra.mxu0 %v265
        %v431 = vpop.f32.mrf.mxu0
        %v432 = vadd.f32 0.0, %v431
        %v433 = vpop.f32.mrf.mxu0
        %v434 = vadd.f32 0.0, %v433
        %435 = vdwg.mxu0
        %v436 = vlaneseq
        %v437 = vshrl.u32 %v436, 7
        %v438 = vadd.s32 %v437, 8
        %v439 = vadd.s32 %v437, 16
        %v440 = vadd.s32 %v437, 24
        %vm441 = vcmp.lt.s32.totalorder %v437, 0
        %v442 = vsub.s32 0, %v437
        %v443 = vsel %vm441, %v442, %v437
        %v444 = vshrl.u32 %v443, 4
        %v445 = vand.u32 %v443, 15
        %v446 = vsub.s32 0, %v445
        %v447 = vsel %vm441, %v446, %v445
        %vm448 = vcmp.lt.s32.totalorder %v438, 0
        %v449 = vsub.s32 0, %v438
        %v450 = vsel %vm448, %v449, %v438
        %v451 = vshrl.u32 %v450, 4
        %v452 = vand.u32 %v450, 15
        %v453 = vsub.s32 0, %v452
        %v454 = vsel %vm448, %v453, %v452
        %vm455 = vcmp.lt.s32.totalorder %v439, 0
        %v456 = vsub.s32 0, %v439
        %v457 = vsel %vm455, %v456, %v439
        %v458 = vshrl.u32 %v457, 4
        %v459 = vand.u32 %v457, 15
        %v460 = vsub.s32 0, %v459
        %v461 = vsel %vm455, %v460, %v459
        %vm462 = vcmp.lt.s32.totalorder %v440, 0
        %v463 = vsub.s32 0, %v440
        %v464 = vsel %vm462, %v463, %v440
        %v465 = vshrl.u32 %v464, 4
        %v466 = vand.u32 %v464, 15
        %v467 = vsub.s32 0, %v466
        %v468 = vsel %vm462, %v467, %v466
        %vm469 = vcmp.ne.s32.totalorder %v447, 0
        %vm470 = vcmp.ne.s32.totalorder %v454, 0
        %vm471 = vcmp.ne.s32.totalorder %v461, 0
        %vm472 = vcmp.ne.s32.totalorder %v468, 0
        %vm473 = vcmp.lt.s32.totalorder %v447, 0
        %vm474 = vcmp.lt.s32.totalorder %v454, 0
        %vm475 = vcmp.lt.s32.totalorder %v461, 0
        %vm476 = vcmp.lt.s32.totalorder %v468, 0
        %vm477 = vmand %vm473, %vm469
        %vm478 = vmand %vm474, %vm470
        %vm479 = vmand %vm475, %vm471
        %vm480 = vmand %vm476, %vm472
        %v481 = vadd.s32 %v447, 16
        %v482 = vadd.s32 %v454, 16
        %v483 = vadd.s32 %v461, 16
        %v484 = vadd.s32 %v468, 16
        %v485 = vsel %vm477, %v481, %v447
        %v486 = vsel %vm478, %v482, %v454
        %v487 = vsel %vm479, %v483, %v461
        %v488 = vsel %vm480, %v484, %v468
        %vm489 = vcmp.gt.s32.totalorder %v485, 0
        %vm490 = vcmp.gt.s32.totalorder %v486, 0
        %vm491 = vcmp.gt.s32.totalorder %v487, 0
        %vm492 = vcmp.gt.s32.totalorder %v488, 0
        %v493 = vrot.slane %v326, 7
        %v494 = vrot.slane %v328, 7
        %v495 = vrot.slane %v331, 7
        %v496 = vrot.slane %v333, 7
        %vm497 = vcmp.lt.s32.totalorder %v437, 1
        %v498 = vsel %vm497, %v495, %v496
        %v499 = vsel %vm497, %v494, %v495
        %v500 = vsel %vm497, %v493, %v494
        %v501 = vsel %vm497, %v496, %v493
        %v502 = vsel %vm489, 1, 0
        %v503 = vsel %vm490, 1, 0
        %v504 = vsel %vm491, 1, 0
        %v505 = vsel %vm492, 1, 0
        %vm506 = vcmp.eq.s32.totalorder %v502, 1
        %vm507 = vcmp.eq.s32.totalorder %v503, 1
        %vm508 = vcmp.eq.s32.totalorder %v504, 1
        %vm509 = vcmp.eq.s32.totalorder %v505, 1
        %v510 = vsel %vm506, %v501, 0.0
        %v511 = vsel %vm507, %v500, 0.0
        %v512 = vsel %vm508, %v499, 0.0
        %v513 = vsel %vm509, %v498, 0.0
        %v530 = vunpack.c.l.b16 %v336
        %v531 = vunpack.c.l.b16 %v337
        %v532 = vunpack.c.l.b16 %v338
        %v533 = vunpack.c.l.b16 %v339
        %v534 = vunpack.c.l.b16 %v340
        %v535 = vunpack.c.l.b16 %v341
        %v536 = vunpack.c.l.b16 %v342
        %v537 = vunpack.c.l.b16 %v343
        %v538 = vunpack.c.l.b16 %v344
        %v539 = vunpack.c.l.b16 %v345
        %v540 = vunpack.c.l.b16 %v346
        %v541 = vunpack.c.l.b16 %v347
        %v542 = vunpack.c.l.b16 %v348
        %v543 = vunpack.c.l.b16 %v349
        %v544 = vunpack.c.l.b16 %v350
        %v545 = vunpack.c.l.b16 %v351
        %v546 = vpack.c.b16 %v531, %v530
        %v547 = vpack.c.b16 %v533, %v532
        %v548 = vpack.c.b16 %v535, %v534
        %v549 = vpack.c.b16 %v537, %v536
        %v550 = vpack.c.b16 %v539, %v538
        %v551 = vpack.c.b16 %v541, %v540
        %v552 = vpack.c.b16 %v543, %v542
        %v553 = vpack.c.b16 %v545, %v544
        %562 = vmatpush.bf16.msra.mxu0 %v553
        %563 = vmatpush.bf16.msra.mxu0 %v552
        %564 = vmatpush.bf16.msra.mxu0 %v551
        %565 = vmatpush.bf16.msra.mxu0 %v550
        %566 = vmatpush.bf16.msra.mxu0 %v549
        %567 = vmatpush.bf16.msra.mxu0 %v548
        %568 = vmatpush.bf16.msra.mxu0 %v547
        %569 = vmatpush.bf16.msra.mxu0 %v546
        %570 = vmatmul.bf16.gmra.mxu0 %v264
        %v571 = vpop.f32.mrf.mxu0
        %v572 = vadd.f32 %v510, %v571
        %v573 = vpop.f32.mrf.mxu0
        %v574 = vadd.f32 %v511, %v573
        %575 = vmatmul.bf16.gmra.mxu0 %v265
        %v576 = vpop.f32.mrf.mxu0
        %v577 = vadd.f32 %v512, %v576
        %v578 = vpop.f32.mrf.mxu0
        %v579 = vadd.f32 %v513, %v578
        %580 = vdwg.mxu0
        %vm581 = vcmp.lt.s32.totalorder %v485, 15
        %vm582 = vcmp.lt.s32.totalorder %v486, 15
        %vm583 = vcmp.lt.s32.totalorder %v487, 15
        %vm584 = vcmp.lt.s32.totalorder %v488, 15
        %v585 = vrot.slane %v427, 1
        %v586 = vrot.slane %v429, 1
        %v587 = vrot.slane %v432, 1
        %v588 = vrot.slane %v434, 1
        %vm589 = vcmp.lt.s32.totalorder %v437, 7
        %v590 = vsel %vm589, %v587, %v588
        %v591 = vsel %vm589, %v586, %v587
        %v592 = vsel %vm589, %v585, %v586
        %v593 = vsel %vm589, %v588, %v585
        %v594 = vsel %vm581, 1, 0
        %v595 = vsel %vm582, 1, 0
        %v596 = vsel %vm583, 1, 0
        %v597 = vsel %vm584, 1, 0
        %vm598 = vcmp.eq.s32.totalorder %v594, 1
        %vm599 = vcmp.eq.s32.totalorder %v595, 1
        %vm600 = vcmp.eq.s32.totalorder %v596, 1
        %vm601 = vcmp.eq.s32.totalorder %v597, 1
        %v602 = vsel %vm598, %v592, 0.0
        %v603 = vsel %vm599, %v591, 0.0
        %v604 = vsel %vm600, %v590, 0.0
        %v605 = vsel %vm601, %v593, 0.0
        %v606 = vadd.f32 %v572, %v602
        %v607 = vadd.f32 %v574, %v603
        %v608 = vadd.f32 %v577, %v604
        %v609 = vadd.f32 %v579, %v605
        %v610 = vld [vmem:[%s2] sm:$0x1]
        %v612 = vperm.slane %v610, 0
        %v614 = vmul.f32 %v606, %v612
        %v615 = vmul.f32 %v607, %v612
        %v616 = vmul.f32 %v608, %v612
        %v617 = vmul.f32 %v609, %v612
        %v618 = vld [vmem:[%s3] sm:$0x1]
        %v620 = vperm.slane %v618, 0
        %v622 = vadd.f32 %v614, %v620
        %v623 = vadd.f32 %v615, %v620
        %v624 = vadd.f32 %v616, %v620
        %v625 = vadd.f32 %v617, %v620
        %v626 = vmax.f32 %v622, 0.0
        %v627 = vmax.f32 %v623, 0.0
        %v628 = vmax.f32 %v624, 0.0
        %v629 = vmax.f32 %v625, 0.0
        %v630 = vadd.f32 %v626, %v627
        %v631 = vrot.slane %v630, 4
        %v632 = vadd.f32 %v630, %v631
        %v633 = vrot.slane %v632, 2
        %v634 = vadd.f32 %v632, %v633
        %v635 = vrot.slane %v634, 1
        %v636 = vadd.f32 %v634, %v635
        %v637 = vadd.f32 %v628, %v629
        %v638 = vrot.slane %v637, 4
        %v639 = vadd.f32 %v637, %v638
        %v640 = vrot.slane %v639, 2
        %v641 = vadd.f32 %v639, %v640
        %v642 = vrot.slane %v641, 1
        %v643 = vadd.f32 %v641, %v642
        %v644 = vrcp.pop 16.0
        %v645 = vmul.f32 16.0, %v644
        %v646 = vsub.f32 1.0, %v645
        %v647 = vmul.f32 %v644, %v646
        %v648 = vadd.f32 %v644, %v647
        %vm649 = vweird.f32 %v644
        %v650 = vsel %vm649, %v644, %v648
        %v651 = vmul.f32 %v636, %v650
        %v652 = vmul.f32 %v643, %v650
        %vm655 = vcmask 1041409
        %v656 = vsel %vm655, %v652, %v651
        %658 = vst [vmem:[%s234] sm:$0x3] %v656
        %s659 = sand.u32 %s119, 1
        %s660 = scalar_lea.sflag [#allocation4], %s659
        %s661 = sand.u32 %s119, 1
        %s662 = smul.addr %s661, 2
        %s663 = scalar_lea.vmem [#allocation7], %s662
        // Predicated region
        $region45: #{tpu_custom_call.1} parent=35 // pred_check
          %p664 = pneg %p129
        $region46: #{tpu_custom_call.1} parent=35 // pred_check_branch
          %666 = sbr.rel (%p664) target = $region48
        $region47: #{tpu_custom_call.1} parent=35 // pred_region
          %668 = vsyncadd %s660, 0
          %s669 = smul.addr %s22, 2
          %s670 = scalar_lea.hbm %s4, %s669
          %s672 = sshll.u32 %s663, 4
          %s673 = int_to_ptr.vmem [resolvable:$true] %s672
          %s674 = sshll.u32 %s670, 4
          %s675 = int_to_ptr.hbm [resolvable:$true] %s674
          %677 = dma.vmem_to_hbm [thread:$0]  %s673, 32, %s675, %s660
        $region48: #{tpu_custom_call.1} parent=35 // pred_fallthru
          _
      $region36: #{tpu_custom_call.1} parent=5 // pred_fallthru
        _
      %p678 = scmp.le.s32.totalorder 2, %s17
      // Predicated region
      $region49: #{tpu_custom_call.1} parent=5 // pred_check
        %p679 = pneg %p678
      $region50: #{tpu_custom_call.1} parent=5 // pred_check_branch
        %681 = sbr.rel (%p679) target = $region52
      $region51: #{tpu_custom_call.1} parent=5 // pred_region
        %s682 = ssub.s32 %s17, 2
        // Predicated region
        $region53: #{tpu_custom_call.1} parent=51 // pred_check
          %p683 = pneg %p135
        $region54: #{tpu_custom_call.1} parent=51 // pred_check_branch
          %685 = sbr.rel (%p683) target = $region56
        $region55: #{tpu_custom_call.1} parent=51 // pred_region
          %s686 = sand.u32 %s120, 1
          %s687 = scalar_lea.sflag [#allocation4], %s686
          %s688 = sand.u32 %s120, 1
          %s689 = smul.addr %s688, 2
          %s690 = scalar_lea.vmem [#allocation7], %s689
          %692 = dma.done %s687, 32
        $region56: #{tpu_custom_call.1} parent=51 // pred_fallthru
          _
      $region52: #{tpu_custom_call.1} parent=5 // pred_fallthru
        _
    $region6: #{tpu_custom_call.1} parent=1 // loop_footer
      %s21 = sadd.s32 1, %s17
    $region7: #{tpu_custom_call.1} parent=1 // loop_footer_branch
      %16 = sbr.rel target = $region3
    $region8: #{tpu_custom_call.1} parent=1 // loop_exit
      _
    %693 = vsyncpa [#allocation3], 1
    %s694 = scalar_lea.sflag [#allocation3], 1
    %695 = vsyncpa %s694, 1
    %696 = vsyncpa [#allocation6], 1
    %697 = vsyncpa [#allocation4], 1
    %s698 = scalar_lea.sflag [#allocation4], 1
    %699 = vsyncpa %s698, 1

</llo_original>
